<compile_context>
chip_gen: v5e
topology: v5e:2x2
jax: 0.10.0
libtpu: 0.0.40
codegen_flags: <defaults>
</compile_context>

<pallas_src>
import math

import jax
import jax.numpy as jnp
from jax.experimental import pallas as pl
from jax.experimental.pallas import tpu as pltpu

# ---- module hyper-parameters (small, consistent with FeedForward) ----
DIM = 32        # dim
HIDDEN = 64     # hidden_dim
B, N = 2, 8     # batch, tokens


def ffn_kernel(x_ref, w1_ref, b1_ref, w2_ref, b2_ref, o_ref):
    """x: (bm, D) bf16; w1: (D, H) bf16; b1: (1, H) f32; w2: (H, D) bf16; b2: (1, D) f32."""
    x = x_ref[...]
    w1 = w1_ref[...]
    w2 = w2_ref[...]

    # Linear 1: bf16 MXU operands, f32 accumulate; bias add in f32 (VPU)
    h = jnp.dot(x, w1, preferred_element_type=jnp.float32) + b1_ref[...]
    # SiLU in f32; the sigmoid goes to the EUP slot (effectively free next to MXU work)
    h = h * jax.nn.sigmoid(h)
    # TODO(synk): nn.Dropout (p=0.0 default / eval mode) is identity -> omitted.
    # Linear 2: cast activation to bf16 for the MXU, accumulate in f32
    y = jnp.dot(h.astype(w2.dtype), w2, preferred_element_type=jnp.float32) + b2_ref[...]

    o_ref[...] = y.astype(o_ref.dtype)


def feed_forward(x, w1, b1, w2, b2, *, block_m=512):
    """JAX wrapper: flatten leading dims, one (row-parallel) pallas_call, no weight repacking."""
    orig_shape = x.shape
    d = orig_shape[-1]
    hidden = w1.shape[1]
    m = math.prod(orig_shape[:-1])

    # bf16 matmul operands (halves DMA bytes, native MXU path); biases stay f32.
    x2 = x.reshape(m, d).astype(jnp.bfloat16)
    w1b = w1.astype(jnp.bfloat16)
    w2b = w2.astype(jnp.bfloat16)
    b1r = b1.reshape(1, hidden).astype(jnp.float32)
    b2r = b2.reshape(1, d).astype(jnp.float32)

    bm = min(block_m, m)
    grid = (pl.cdiv(m, bm),)

    flops = 4 * m * d * hidden                      # two MXU matmuls
    bytes_accessed = (x2.size * 2 + w1b.size * 2 + w2b.size * 2
                      + b1r.size * 4 + b2r.size * 4 + m * d * 4)

    y = pl.pallas_call(
        ffn_kernel,
        out_shape=jax.ShapeDtypeStruct((m, d), x.dtype),
        grid_spec=pl.GridSpec(
            grid=grid,
            in_specs=[
                pl.BlockSpec((bm, d), lambda i: (i, 0)),          # x row-block
                pl.BlockSpec((d, hidden), lambda i: (0, 0)),      # w1 (resident)
                pl.BlockSpec((1, hidden), lambda i: (0, 0)),      # b1
                pl.BlockSpec((hidden, d), lambda i: (0, 0)),      # w2
                pl.BlockSpec((1, d), lambda i: (0, 0)),           # b2
            ],
            out_specs=pl.BlockSpec((bm, d), lambda i: (i, 0)),
        ),
        compiler_params=pltpu.CompilerParams(
            dimension_semantics=("parallel",)),
        cost_estimate=pl.CostEstimate(flops=flops,
                                      transcendentals=m * hidden,
                                      bytes_accessed=bytes_accessed),
    )(x2, w1b, b1r, w2b, b2r)
    return y.reshape(orig_shape)


# ------------------------- pure-JAX reference -------------------------
def ffn_ref(x, w1, b1, w2, b2):
    h = x @ w1 + b1
    h = h * jax.nn.sigmoid(h)        # SiLU
    return h @ w2 + b2


if __name__ == "__main__":
    root = jax.random.PRNGKey(0)
    kx, k1, k2, k3, k4 = jax.random.split(root, 5)

    x = jax.random.normal(kx, (B, N, DIM), jnp.float32)
    w1 = jax.random.normal(k1, (DIM, HIDDEN), jnp.float32) / jnp.sqrt(jnp.float32(DIM))
    b1 = jax.random.normal(k2, (HIDDEN,), jnp.float32) * 0.02
    w2 = jax.random.normal(k3, (HIDDEN, DIM), jnp.float32) / jnp.sqrt(jnp.float32(HIDDEN))
    b2 = jax.random.normal(k4, (DIM,), jnp.float32) * 0.02

    y = jax.block_until_ready(feed_forward(x, w1, b1, w2, b2))

    # correctness check against a pure-JAX reference of the PyTorch forward
    y_ref = jax.block_until_ready(ffn_ref(x, w1, b1, w2, b2))

    assert y.shape == (B, N, DIM)
    assert jnp.allclose(y, y_ref, rtol=1e-2, atol=1e-2), "mismatch vs reference"

    print("KERNEL_OK")
</pallas_src>

<mosaic_0001>
module attributes {stable_mosaic.version = 11 : i64} {
  func.func @ffn_kernel(%arg0: i32, %arg1: memref<16x32xbf16, #tpu.memory_space<vmem>>, %arg2: memref<32x64xbf16, #tpu.memory_space<vmem>>, %arg3: memref<1x64xf32, #tpu.memory_space<vmem>>, %arg4: memref<64x32xbf16, #tpu.memory_space<vmem>>, %arg5: memref<1x32xf32, #tpu.memory_space<vmem>>, %arg6: memref<16x32xf32, #tpu.memory_space<vmem>>) attributes {dimension_semantics = [#tpu.dimension_semantics<parallel>], iteration_bounds = array<i64: 1>, scalar_prefetch = 0 : i64, scratch_operands = 0 : i64, tpu.core_type = #tpu.core_type<tc>, window_params = [{transform_indices = @transform_0, window_bounds = array<i64: 16, 32>}, {pipeline_mode = #tpu.pipeline_mode<synchronous>, transform_indices = @transform_1, window_bounds = array<i64: 32, 64>}, {pipeline_mode = #tpu.pipeline_mode<synchronous>, transform_indices = @transform_2, window_bounds = array<i64: 1, 64>}, {pipeline_mode = #tpu.pipeline_mode<synchronous>, transform_indices = @transform_3, window_bounds = array<i64: 64, 32>}, {pipeline_mode = #tpu.pipeline_mode<synchronous>, transform_indices = @transform_4, window_bounds = array<i64: 1, 32>}, {transform_indices = @transform_5, window_bounds = array<i64: 16, 32>}]} {
    %c0 = arith.constant 0 : index
    %c0_0 = arith.constant 0 : index
    %0 = vector.load %arg1[%c0, %c0_0] : memref<16x32xbf16, #tpu.memory_space<vmem>>, vector<16x32xbf16>
    %c0_1 = arith.constant 0 : index
    %c0_2 = arith.constant 0 : index
    %1 = vector.load %arg2[%c0_1, %c0_2] : memref<32x64xbf16, #tpu.memory_space<vmem>>, vector<32x64xbf16>
    %c0_3 = arith.constant 0 : index
    %c0_4 = arith.constant 0 : index
    %2 = vector.load %arg4[%c0_3, %c0_4] : memref<64x32xbf16, #tpu.memory_space<vmem>>, vector<64x32xbf16>
    %cst = arith.constant dense<0.000000e+00> : vector<16x64xf32>
    %3 = tpu.matmul %0, %1, %cst {dimension_numbers = #tpu.dot_dimension_numbers<[1], [0], [0], [1], [0, 0, 1, 1], [], []>} : vector<16x32xbf16>, vector<32x64xbf16>, vector<16x64xf32> -> vector<16x64xf32>
    %c0_5 = arith.constant 0 : index
    %c0_6 = arith.constant 0 : index
    %4 = vector.load %arg3[%c0_5, %c0_6] : memref<1x64xf32, #tpu.memory_space<vmem>>, vector<1x64xf32>
    %5 = vector.broadcast %4 : vector<1x64xf32> to vector<16x64xf32>
    %6 = arith.addf %3, %5 : vector<16x64xf32>
    %7 = arith.negf %6 : vector<16x64xf32>
    %8 = math.exp %7 : vector<16x64xf32>
    %cst_7 = arith.constant 1.000000e+00 : f32
    %9 = vector.broadcast %cst_7 : f32 to vector<16x64xf32>
    %10 = arith.addf %9, %8 : vector<16x64xf32>
    %11 = arith.divf %9, %10 : vector<16x64xf32>
    %12 = arith.mulf %6, %11 : vector<16x64xf32>
    %13 = arith.truncf %12 : vector<16x64xf32> to vector<16x64xbf16>
    %cst_8 = arith.constant dense<0.000000e+00> : vector<16x32xf32>
    %14 = tpu.matmul %13, %2, %cst_8 {dimension_numbers = #tpu.dot_dimension_numbers<[1], [0], [0], [1], [0, 0, 1, 1], [], []>} : vector<16x64xbf16>, vector<64x32xbf16>, vector<16x32xf32> -> vector<16x32xf32>
    %c0_9 = arith.constant 0 : index
    %c0_10 = arith.constant 0 : index
    %15 = vector.load %arg5[%c0_9, %c0_10] : memref<1x32xf32, #tpu.memory_space<vmem>>, vector<1x32xf32>
    %16 = vector.broadcast %15 : vector<1x32xf32> to vector<16x32xf32>
    %17 = arith.addf %14, %16 : vector<16x32xf32>
    %c0_11 = arith.constant 0 : index
    %c0_12 = arith.constant 0 : index
    %18 = vector.load %arg6[%c0_11, %c0_12] : memref<16x32xf32, #tpu.memory_space<vmem>>, vector<16x32xf32>
    tpu.vector_store %arg6[%c0_11, %c0_12], %17 {strides = array<i32>} : memref<16x32xf32, #tpu.memory_space<vmem>>, vector<16x32xf32>,
    return
  }
  func.func @transform_0(%arg0: i32) -> (i32, i32) {
    %c0_i32 = arith.constant 0 : i32
    %c0_i32_0 = arith.constant 0 : i32
    return %arg0, %c0_i32 : i32, i32
  }
  func.func @transform_1(%arg0: i32) -> (i32, i32) {
    %c0_i32 = arith.constant 0 : i32
    %c0_i32_0 = arith.constant 0 : i32
    %c0_i32_1 = arith.constant 0 : i32
    return %c0_i32, %c0_i32_0 : i32, i32
  }
  func.func @transform_2(%arg0: i32) -> (i32, i32) {
    %c0_i32 = arith.constant 0 : i32
    %c0_i32_0 = arith.constant 0 : i32
    %c0_i32_1 = arith.constant 0 : i32
    return %c0_i32, %c0_i32_0 : i32, i32
  }
  func.func @transform_3(%arg0: i32) -> (i32, i32) {
    %c0_i32 = arith.constant 0 : i32
    %c0_i32_0 = arith.constant 0 : i32
    %c0_i32_1 = arith.constant 0 : i32
    return %c0_i32, %c0_i32_0 : i32, i32
  }
  func.func @transform_4(%arg0: i32) -> (i32, i32) {
    %c0_i32 = arith.constant 0 : i32
    %c0_i32_0 = arith.constant 0 : i32
    %c0_i32_1 = arith.constant 0 : i32
    return %c0_i32, %c0_i32_0 : i32, i32
  }
  func.func @transform_5(%arg0: i32) -> (i32, i32) {
    %c0_i32 = arith.constant 0 : i32
    %c0_i32_0 = arith.constant 0 : i32
    return %arg0, %c0_i32 : i32, i32
  }
}

</mosaic_0001>

<llo_original>
// kernel: tpu_custom_call.1
$region0: #{tpu_custom_call.1}
  #allocation0 [shape = 'u32[]', space=smem, size = 0x4, offset = 0x4, fixed_abs, tag = 'smem constant byte address 0x4 - core index']
  #allocation1 [shape = 'u32[72,128]{1,0:T(1,128)}', space=vmem, size = 0x9000, scoped, tag = 'internal scratch']
  %s0 = inlined_call_operand.vmem [shape: bf16[16,32], index: 0, kind: input, shape index: {}]
  %s1 = inlined_call_operand.vmem [shape: bf16[32,64], index: 1, kind: input, shape index: {}]
  %s2 = inlined_call_operand.vmem [shape: f32[1,64], index: 2, kind: input, shape index: {}]
  %s3 = inlined_call_operand.vmem [shape: bf16[64,32], index: 3, kind: input, shape index: {}]
  %s4 = inlined_call_operand.vmem [shape: f32[1,32], index: 4, kind: input, shape index: {}]
  %s5 = inlined_call_operand.hbm [shape: f32[16,32], index: 5, kind: output, shape index: {}]
  %s6 = sld [smem:[#allocation0]]
  $region30: #{tpu_custom_call.1} parent=0
    _
  %s8 = ssub.s32 1, %s6
  %s9 = scalar_select 0, %s8, %s6
  $region1: #{tpu_custom_call.1} parent=0
    #allocation2 [shape = 'u8[8192]{0}', space=vmem, size = 0x2000, scoped, tag = 'output window, operand 0, single buffered']
    #allocation3 [shape = 's32[1]{0}', space=sflag, size = 0x4, scoped, tag = 'scoped memory for tpu_custom_call.1']
    %10 = vsyncpa [#allocation3], 0
    // Predicated region
    $region2: #{tpu_custom_call.1} parent=1 // pred_check
      _
    $region3: #{tpu_custom_call.1} parent=1 // pred_check_branch
      %12 = sbr.rel (0) target = $region5
    $region4: #{tpu_custom_call.1} parent=1 // pred_region
      _
    $region5: #{tpu_custom_call.1} parent=1 // pred_fallthru
      _
    // Predicated region
    $region6: #{tpu_custom_call.1} parent=1 // pred_check
      _
    $region7: #{tpu_custom_call.1} parent=1 // pred_check_branch
      %14 = sbr.rel (0) target = $region9
    $region8: #{tpu_custom_call.1} parent=1 // pred_region
      _
    $region9: #{tpu_custom_call.1} parent=1 // pred_fallthru
      _
    // Predicated region
    $region10: #{tpu_custom_call.1} parent=1 // pred_check
      _
    $region11: #{tpu_custom_call.1} parent=1 // pred_check_branch
      %16 = sbr.rel (0) target = $region13
    $region12: #{tpu_custom_call.1} parent=1 // pred_region
      _
    $region13: #{tpu_custom_call.1} parent=1 // pred_fallthru
      _
    // Predicated region
    $region14: #{tpu_custom_call.1} parent=1 // pred_check
      _
    $region15: #{tpu_custom_call.1} parent=1 // pred_check_branch
      %18 = sbr.rel (0) target = $region17
    $region16: #{tpu_custom_call.1} parent=1 // pred_region
      _
    $region17: #{tpu_custom_call.1} parent=1 // pred_fallthru
      _
    // Predicated region
    $region18: #{tpu_custom_call.1} parent=1 // pred_check
      _
    $region19: #{tpu_custom_call.1} parent=1 // pred_check_branch
      %20 = sbr.rel (0) target = $region21
    $region20: #{tpu_custom_call.1} parent=1 // pred_region
      _
    $region21: #{tpu_custom_call.1} parent=1 // pred_fallthru
      _
    %v22 = vld [vmem:[%s0] sm:$0xf]
    %v23 = vld [vmem:[%s0 + $0x4] sm:$0xf]
    %v24 = vld [vmem:[%s1] sm:$0xf]
    %v25 = vld [vmem:[%s1 + $0x4] sm:$0xf]
    %v26 = vld [vmem:[%s1 + $0x8] sm:$0xf]
    %v27 = vld [vmem:[%s1 + $0xc] sm:$0xf]
    %v28 = vld [vmem:[%s3] sm:$0xf]
    %v29 = vld [vmem:[%s3 + $0x4] sm:$0xf]
    %v30 = vld [vmem:[%s3 + $0x8] sm:$0xf]
    %v31 = vld [vmem:[%s3 + $0xc] sm:$0xf]
    %v32 = vld [vmem:[%s3 + $0x10] sm:$0xf]
    %v33 = vld [vmem:[%s3 + $0x14] sm:$0xf]
    %v34 = vld [vmem:[%s3 + $0x18] sm:$0xf]
    %v35 = vld [vmem:[%s3 + $0x1c] sm:$0xf]
    %v36 = vld [vmem:[%s2] sm:$0x1]
    %v38 = vperm.slane %v36, 0
    %v42 = vunpack.c.l.b16 %v22
    %v43 = vunpack.c.l.b16 %v23
    %v44 = vpack.c.b16 %v43, %v42
    %v49 = vunpack.c.l.b16 %v24
    %v50 = vunpack.c.l.b16 %v25
    %v51 = vunpack.c.l.b16 %v26
    %v52 = vunpack.c.l.b16 %v27
    %v53 = vpack.c.b16 %v50, %v49
    %v54 = vpack.c.b16 %v52, %v51
    %vm57 = vcmask 261120
    %v59 = vsel %vm57, %v44, 0
    %61 = vmatpush.bf16.msra.mxu0 0
    %62 = vmatpush.bf16.msra.mxu0 0
    %63 = vmatpush.bf16.msra.mxu0 0
    %64 = vmatpush.bf16.msra.mxu0 0
    %65 = vmatpush.bf16.msra.mxu0 0
    %66 = vmatpush.bf16.msra.mxu0 0
    %67 = vmatpush.bf16.msra.mxu0 %v54
    %68 = vmatpush.bf16.msra.mxu0 %v53
    %69 = vmatmul.bf16.gmra.mxu0 %v59
    %v70 = vpop.f32.mrf.mxu0
    %v71 = vadd.f32 %v38, %v70
    %v72 = vpop.f32.mrf.mxu0
    %v73 = vadd.f32 %v38, %v72
    %74 = vdwg.mxu0
    %v75 = vxor.u32 %v71, 2147483648
    %v76 = vxor.u32 %v73, 2147483648
    %v77 = vmul.f32 %v75, 1.442695
    %v78 = vpow.pop %v77
    %v79 = vmul.f32 %v76, 1.442695
    %v80 = vpow.pop %v79
    %v81 = vadd.f32 %v78, 1.0
    %v82 = vadd.f32 %v80, 1.0
    %v83 = vrcp.pop %v81
    %v84 = vmul.f32 %v81, %v83
    %v85 = vsub.f32 1.0, %v84
    %v86 = vmul.f32 %v83, %v85
    %v87 = vadd.f32 %v83, %v86
    %vm88 = vweird.f32 %v81
    %vm89 = vweird.f32 %v83
    %vm90 = vmor %vm88, %vm89
    %v91 = vsel %vm90, %v83, %v87
    %v92 = vand.u32 2147483647, %v81
    %vm93 = vcmp.eq.f32.partialorder %v92, 8.507059e+37
    %v94 = vand.u32 %v81, 2147483648
    %v95 = vor.u32 1.1754944e-38, %v94
    %v96 = vsel %vm93, %v95, %v91
    %v97 = vmul.f32 1.0, %v96
    %v98 = vrcp.pop %v82
    %v99 = vmul.f32 %v82, %v98
    %v100 = vsub.f32 1.0, %v99
    %v101 = vmul.f32 %v98, %v100
    %v102 = vadd.f32 %v98, %v101
    %vm103 = vweird.f32 %v82
    %vm104 = vweird.f32 %v98
    %vm105 = vmor %vm103, %vm104
    %v106 = vsel %vm105, %v98, %v102
    %v107 = vand.u32 2147483647, %v82
    %vm108 = vcmp.eq.f32.partialorder %v107, 8.507059e+37
    %v109 = vand.u32 %v82, 2147483648
    %v110 = vor.u32 1.1754944e-38, %v109
    %v111 = vsel %vm108, %v110, %v106
    %v112 = vmul.f32 1.0, %v111
    %v113 = vmul.f32 %v71, %v97
    %v114 = vmul.f32 %v73, %v112
    %v115 = vpack.c.bf16 %v114, %v113
    %v116 = vld [vmem:[%s4] sm:$0x1]
    %v118 = vperm.slane %v116, 0
    %v128 = vunpack.c.l.b16 %v28
    %v129 = vunpack.c.l.b16 %v29
    %v130 = vunpack.c.l.b16 %v30
    %v131 = vunpack.c.l.b16 %v31
    %v132 = vunpack.c.l.b16 %v32
    %v133 = vunpack.c.l.b16 %v33
    %v134 = vunpack.c.l.b16 %v34
    %v135 = vunpack.c.l.b16 %v35
    %v136 = vpack.c.b16 %v129, %v128
    %v137 = vpack.c.b16 %v131, %v130
    %v138 = vpack.c.b16 %v133, %v132
    %v139 = vpack.c.b16 %v135, %v134
    %vm144 = vcmask 523264
    %v146 = vsel %vm144, %v115, 0
    %148 = vmatpush.bf16.msra.mxu0 0
    %149 = vmatpush.bf16.msra.mxu0 0
    %150 = vmatpush.bf16.msra.mxu0 0
    %151 = vmatpush.bf16.msra.mxu0 0
    %152 = vmatpush.bf16.msra.mxu0 %v139
    %153 = vmatpush.bf16.msra.mxu0 %v138
    %154 = vmatpush.bf16.msra.mxu0 %v137
    %155 = vmatpush.bf16.msra.mxu0 %v136
    %156 = vmatmul.bf16.gmra.mxu0 %v146
    %v157 = vpop.f32.mrf.mxu0
    %v158 = vadd.f32 %v118, %v157
    %v159 = vpop.f32.mrf.mxu0
    %v160 = vadd.f32 %v118, %v159
    %161 = vdwg.mxu0
    %162 = vst.msk [vmem:[#allocation2] sm:$0xff] %vm57, %v158
    %163 = vst.msk [vmem:[#allocation2 + $0x8] sm:$0xff] %vm57, %v160
    // Predicated region
    $region22: #{tpu_custom_call.1} parent=1 // pred_check
      _
    $region23: #{tpu_custom_call.1} parent=1 // pred_check_branch
      %165 = sbr.rel (0) target = $region25
    $region24: #{tpu_custom_call.1} parent=1 // pred_region
      %167 = vsyncadd [#allocation3], 0
      %s168 = sshll.u32 [#allocation2], 4
      %s169 = int_to_ptr.vmem [resolvable:$true] %s168
      %s170 = sshll.u32 %s5, 4
      %s171 = int_to_ptr.hbm [resolvable:$true] %s170
      %176 = dma.vmem_to_hbm [thread:$0]  %s169, 256, %s171, [#allocation3], 128, 128, 8
    $region25: #{tpu_custom_call.1} parent=1 // pred_fallthru
      _
    // Predicated region
    $region26: #{tpu_custom_call.1} parent=1 // pred_check
      _
    $region27: #{tpu_custom_call.1} parent=1 // pred_check_branch
      %178 = sbr.rel (0) target = $region29
    $region28: #{tpu_custom_call.1} parent=1 // pred_region
      %180 = dma.done [#allocation3], 256
    $region29: #{tpu_custom_call.1} parent=1 // pred_fallthru
      _
    %181 = vsyncpa [#allocation3], 1

</llo_original>
